<compile_context>
chip_gen: v7x
topology: tpu7x:2x2x1
jax: 0.10.0
libtpu: 0.0.40
codegen_flags: <defaults>
</compile_context>

<pallas_src>
import functools
import math

import jax
import jax.numpy as jnp
from jax.experimental import pallas as pl
from jax.experimental.pallas import tpu as pltpu


def sig_ntm_kernel(ntm_ref, cdist_ref, out_ref, *, num_class):
    """sigmoid + class-dist scale + in-kernel identity prior + row L1 norm.

    Operates on the full (rows_padded, cols_padded) block in VMEM.  Padded
    columns carry class_dist == 0, so they contribute 0 everywhere and need no
    masking; padded rows are sliced off by the wrapper.
    """
    # Stable sigmoid: transcendental on the EUP.
    t = jax.nn.sigmoid(ntm_ref[...])

    # Scale by class distribution: (R, Cpad) * (1, Cpad) broadcasts on the VPU.
    t = t * cdist_ref[...]

    # Identity prior generated in-kernel: 1.0 where row == col and row < C
    # (the eye(C) block), 0.0 elsewhere (zeros block, novel rows, padding).
    rows = jax.lax.broadcasted_iota(jnp.int32, t.shape, 0)
    cols = jax.lax.broadcasted_iota(jnp.int32, t.shape, 1)
    prior = jnp.where((rows == cols) & (rows < num_class),
                      jnp.float32(1.0), jnp.float32(0.0))
    t = t + prior

    # Row L1 norm (F.normalize eps = 1e-12).  abs() kept for exact p=1
    # semantics (one VPU op; all current terms are non-negative anyway).
    row_l1 = jnp.sum(jnp.abs(t), axis=1, keepdims=True)
    denom = jnp.maximum(row_l1, 1e-12)

    # Approx reciprocal on the EUP (free slot) + one Newton-Raphson refinement
    # on the VPU to restore ~fp32 accuracy:  inv <- inv * (2 - denom * inv).
    inv = pl.reciprocal(denom, approx=True)
    inv = inv * (2.0 - denom * inv)

    out_ref[...] = t * inv


def _round_up(x, m):
    return ((x + m - 1) // m) * m


def sig_ntm_forward(ntm, class_dist_row):
    rows, cols = ntm.shape
    assert class_dist_row.shape == (1, cols)

    # Lane-dense / sublane-aligned padding: cols -> multiple of 128 (lanes),
    # rows -> multiple of 8 (sublanes).  class_dist is ZERO-padded so padded
    # columns contribute nothing to the L1 sums.
    rows_p = _round_up(rows, 8)
    cols_p = _round_up(cols, 128)

    ntm_p = jnp.zeros((rows_p, cols_p), jnp.float32).at[:rows, :cols].set(
        ntm.astype(jnp.float32))
    cdist_p = jnp.zeros((1, cols_p), jnp.float32).at[:, :cols].set(
        class_dist_row.astype(jnp.float32))

    kernel = functools.partial(sig_ntm_kernel, num_class=cols)

    out_p = pl.pallas_call(
        kernel,
        out_shape=jax.ShapeDtypeStruct((rows_p, cols_p), jnp.float32),
        # Whole-array VMEM blocks, no grid: single invocation, no per-step
        # overhead, no pointless tiling of a few-vreg working set.
        in_specs=[
            pl.BlockSpec(memory_space=pltpu.MemorySpace.VMEM),  # padded NTM
            pl.BlockSpec(memory_space=pltpu.MemorySpace.VMEM),  # padded class dist
        ],
        out_specs=pl.BlockSpec(memory_space=pltpu.MemorySpace.VMEM),
    )(ntm_p, cdist_p)

    return out_p[:rows, :cols]


def make_params(num_class, key):
    """Deterministic synthetic parameters matching the module's __init__ shapes."""
    C = num_class
    R = 2 * C  # closed-set + novel classes (rows of the transition matrix)

    k_ntm, k_dist = jax.random.split(key)

    # kaiming_normal_(mode='fan_out', nonlinearity='relu'):
    #   std = gain / sqrt(fan_out), gain = sqrt(2), fan_out = size(0) = R
    std = math.sqrt(2.0) / math.sqrt(R)
    ntm = std * jax.random.normal(k_ntm, (R, C), dtype=jnp.float32)

    # Synthetic class distribution (replaces the .npy load), a single row.
    logits = jax.random.normal(k_dist, (C,), dtype=jnp.float32)
    class_dist_row = jax.nn.softmax(logits)[None, :]  # (1, C), non-negative

    return ntm, class_dist_row


def reference_forward(ntm, class_dist_row):
    rows, cols = ntm.shape
    identity_prior = jnp.concatenate(
        [jnp.eye(cols, dtype=jnp.float32),
         jnp.zeros((rows - cols, cols), dtype=jnp.float32)],
        axis=0,
    )
    t = jax.nn.sigmoid(ntm)
    t = t * class_dist_row + identity_prior
    row_l1 = jnp.sum(jnp.abs(t), axis=1, keepdims=True)
    return t / jnp.maximum(row_l1, 1e-12)


if __name__ == "__main__":
    num_class = 8
    key = jax.random.PRNGKey(0)

    ntm, class_dist_row = make_params(num_class, key)

    t_kernel = sig_ntm_forward(ntm, class_dist_row)
    jax.block_until_ready(t_kernel)

    t_ref = reference_forward(ntm, class_dist_row)
    assert t_kernel.shape == (2 * num_class, num_class)
    assert jnp.allclose(t_kernel, t_ref, atol=1e-5, rtol=1e-5), "mismatch vs reference"
    # Rows should sum to 1 (L1-normalized, all entries non-negative here).
    assert jnp.allclose(jnp.sum(t_kernel, axis=1), 1.0, atol=1e-5)

    print("KERNEL_OK")
</pallas_src>

<mosaic_0001>
module attributes {stable_mosaic.version = 11 : i64} {
  func.func @sig_ntm_kernel(%arg0: memref<16x128xf32, #tpu.memory_space<vmem>>, %arg1: memref<1x128xf32, #tpu.memory_space<vmem>>, %arg2: memref<16x128xf32, #tpu.memory_space<vmem>>) attributes {dimension_semantics = [], scalar_prefetch = 0 : i64, scratch_operands = 0 : i64, tpu.core_type = #tpu.core_type<tc>} {
    %c0 = arith.constant 0 : index
    %c0_0 = arith.constant 0 : index
    %0 = vector.load %arg0[%c0, %c0_0] : memref<16x128xf32, #tpu.memory_space<vmem>>, vector<16x128xf32>
    %1 = arith.negf %0 : vector<16x128xf32>
    %2 = math.exp %1 : vector<16x128xf32>
    %cst = arith.constant 1.000000e+00 : f32
    %3 = vector.broadcast %cst : f32 to vector<16x128xf32>
    %4 = arith.addf %3, %2 : vector<16x128xf32>
    %5 = arith.divf %3, %4 : vector<16x128xf32>
    %c0_1 = arith.constant 0 : index
    %c0_2 = arith.constant 0 : index
    %6 = vector.load %arg1[%c0_1, %c0_2] : memref<1x128xf32, #tpu.memory_space<vmem>>, vector<1x128xf32>
    %7 = vector.broadcast %6 : vector<1x128xf32> to vector<16x128xf32>
    %8 = arith.mulf %5, %7 : vector<16x128xf32>
    %9 = tpu.iota {dimensions = array<i32: 0>} : vector<16x128xi32>
    %10 = tpu.iota {dimensions = array<i32: 1>} : vector<16x128xi32>
    %11 = arith.cmpi eq, %9, %10 : vector<16x128xi32>
    %c8_i32 = arith.constant 8 : i32
    %12 = vector.broadcast %c8_i32 : i32 to vector<16x128xi32>
    %13 = arith.cmpi slt, %9, %12 : vector<16x128xi32>
    %14 = arith.andi %11, %13 : vector<16x128xi1>
    %cst_3 = arith.constant 1.000000e+00 : f32
    %cst_4 = arith.constant 0.000000e+00 : f32
    %15 = vector.broadcast %cst_3 : f32 to vector<16x128xf32>
    %16 = vector.broadcast %cst_4 : f32 to vector<16x128xf32>
    %17 = arith.select %14, %15, %16 : vector<16x128xi1>, vector<16x128xf32>
    %18 = arith.addf %8, %17 : vector<16x128xf32>
    %19 = math.absf %18 : vector<16x128xf32>
    %cst_5 = arith.constant dense<0.000000e+00> : vector<16xf32>
    %20 = vector.multi_reduction <add>, %19, %cst_5 [1] : vector<16x128xf32> to vector<16xf32>
    %21 = vector.shape_cast %20 : vector<16xf32> to vector<16x1xf32>
    %cst_6 = arith.constant 9.99999996E-13 : f32
    %22 = vector.broadcast %cst_6 : f32 to vector<16x1xf32>
    %23 = arith.maximumf %21, %22 : vector<16x1xf32>
    %24 = tpu.reciprocal %23 {approx = true} : vector<16x1xf32> -> vector<16x1xf32>
    %25 = arith.mulf %23, %24 : vector<16x1xf32>
    %cst_7 = arith.constant 2.000000e+00 : f32
    %26 = vector.broadcast %cst_7 : f32 to vector<16x1xf32>
    %27 = arith.subf %26, %25 : vector<16x1xf32>
    %28 = arith.mulf %24, %27 : vector<16x1xf32>
    %29 = vector.broadcast %28 : vector<16x1xf32> to vector<16x128xf32>
    %30 = arith.mulf %18, %29 : vector<16x128xf32>
    %c0_8 = arith.constant 0 : index
    %c0_9 = arith.constant 0 : index
    %31 = vector.load %arg2[%c0_8, %c0_9] : memref<16x128xf32, #tpu.memory_space<vmem>>, vector<16x128xf32>
    tpu.vector_store %arg2[%c0_8, %c0_9], %30 {strides = array<i32>} : memref<16x128xf32, #tpu.memory_space<vmem>>, vector<16x128xf32>,
    return
  }
}

</mosaic_0001>

<llo_original>
// kernel: tpu_custom_call.1
$region0: #{tpu_custom_call.1}
  #allocation0 [shape = 'u32[]', space=smem, size = 0x4, offset = 0x4, fixed_abs, tag = 'smem constant byte address 0x4 - core index']
  #allocation1 [shape = 'u32[144,128]{1,0:T(1,128)}', space=vmem, size = 0x12000, scoped, tag = 'internal scratch']
  %s0 = inlined_call_operand.hbm [shape: f32[16,128], index: 0, kind: input, shape index: {}]
  %s1 = inlined_call_operand.vmem [shape: f32[1,128], index: 1, kind: input, shape index: {}]
  %s2 = inlined_call_operand.hbm [shape: f32[16,128], index: 2, kind: output, shape index: {}]
  %s3 = sld [smem:[#allocation0]]
  $region22: #{tpu_custom_call.1} parent=0
    _
  %s5 = ssub.s32 1, %s3
  %s6 = scalar_select 0, %s5, %s3
  $region1: #{tpu_custom_call.1} parent=0
    #allocation2 [shape = 'u8[8192]{0}', space=vmem, size = 0x2000, scoped, tag = 'input window, operand 0, single buffered']
    #allocation3 [shape = 's32[1]{0}', space=sflag, size = 0x4, scoped, tag = 'scoped memory for tpu_custom_call.1']
    #allocation4 [shape = 's32[1]{0}', space=sflag, size = 0x4, scoped, tag = 'scoped memory for tpu_custom_call.1']
    #allocation5 [shape = 'u8[8192]{0}', space=vmem, size = 0x2000, scoped, tag = 'output window, operand 0, single buffered']
    %7 = vsyncpa [#allocation3], 0
    %8 = vsyncpa [#allocation4], 0
    // Predicated region
    $region2: #{tpu_custom_call.1} parent=1 // pred_check
      _
    $region3: #{tpu_custom_call.1} parent=1 // pred_check_branch
      %10 = sbr.rel (0) target = $region5
    $region4: #{tpu_custom_call.1} parent=1 // pred_region
      %s12 = ssub.s32 256, 256
      %13 = vsyncadd [#allocation3], %s12
      %s14 = sshll.u32 [#allocation2], 4
      %s15 = int_to_ptr.vmem [resolvable:$true] %s14
      %20 = dma.hbm_to_vmem [thread:$0]  %s0, 256, %s15, [#allocation3], 128, 128, 8
    $region5: #{tpu_custom_call.1} parent=1 // pred_fallthru
      _
    // Predicated region
    $region6: #{tpu_custom_call.1} parent=1 // pred_check
      _
    $region7: #{tpu_custom_call.1} parent=1 // pred_check_branch
      %22 = sbr.rel (0) target = $region9
    $region8: #{tpu_custom_call.1} parent=1 // pred_region
      _
    $region9: #{tpu_custom_call.1} parent=1 // pred_fallthru
      _
    // Predicated region
    $region10: #{tpu_custom_call.1} parent=1 // pred_check
      _
    $region11: #{tpu_custom_call.1} parent=1 // pred_check_branch
      %24 = sbr.rel (0) target = $region13
    $region12: #{tpu_custom_call.1} parent=1 // pred_region
      %25 = dma.done [#allocation3], 256
    $region13: #{tpu_custom_call.1} parent=1 // pred_fallthru
      _
    %v26 = vld [vmem:[#allocation2] sm:$0xff]
    %v27 = vld [vmem:[#allocation2 + $0x8] sm:$0xff]
    %v28 = vxor.u32 %v26, 2147483648
    %v29 = vxor.u32 %v27, 2147483648
    %v30 = vmul.f32 %v28, 1.442695
    %v31 = vpow.pop %v30
    %v32 = vmul.f32 %v29, 1.442695
    %v33 = vpow.pop %v32
    %v34 = vadd.f32 %v31, 1.0
    %v35 = vadd.f32 %v33, 1.0
    %v36 = vrcp.pop %v34
    %v37 = vmul.f32 1.0, %v36
    %v38 = vrcp.pop %v35
    %v39 = vmul.f32 1.0, %v38
    %v40 = vld [vmem:[%s1] sm:$0x1]
    %v42 = vlaneseq
    %v43 = vshrl.u32 %v42, 7
    %v44 = vsub.s32 0, %v43
    %v45 = vrot.slane %v40, %v44
    %v47 = vmul.f32 %v37, %v45
    %v48 = vmul.f32 %v39, %v45
    %v49 = vlaneseq
    %v50 = vshrl.u32 %v49, 7
    %v51 = vadd.s32 %v50, 8
    %v52 = vlaneseq
    %v53 = vand.u32 %v52, 127
    %vm54 = vcmp.eq.s32.totalorder %v50, %v53
    %vm55 = vcmp.eq.s32.totalorder %v51, %v53
    %vm56 = vcmp.lt.s32.totalorder %v50, 8
    %vm57 = vcmp.lt.s32.totalorder %v51, 8
    %vm58 = vmand %vm54, %vm56
    %vm59 = vmand %vm55, %vm57
    %v60 = vsel %vm58, 1.0, 0.0
    %v61 = vsel %vm59, 1.0, 0.0
    %v62 = vadd.f32 %v47, %v60
    %v63 = vadd.f32 %v48, %v61
    %v64 = vand.u32 2147483647, %v62
    %v65 = vand.u32 2147483647, %v63
    %66 = vadd.xlane.f32.xlu0 %v64
    %v67 = vpop.xlane.xlu0 %66
    %68 = vadd.xlane.f32.xlu0 %v65
    %v69 = vpop.xlane.xlu0 %68
    %v70 = vmax.f32 %v67, 1e-12
    %v71 = vmax.f32 %v69, 1e-12
    %v72 = vrcp.pop %v70
    %v73 = vrcp.pop %v71
    %v74 = vmul.f32 %v70, %v72
    %v75 = vmul.f32 %v71, %v73
    %v76 = vsub.f32 2.0, %v74
    %v77 = vsub.f32 2.0, %v75
    %v78 = vmul.f32 %v72, %v76
    %v79 = vmul.f32 %v73, %v77
    %v80 = vmul.f32 %v62, %v78
    %v81 = vmul.f32 %v63, %v79
    %82 = vst [vmem:[#allocation5] sm:$0xff] %v80
    %83 = vst [vmem:[#allocation5 + $0x8] sm:$0xff] %v81
    // Predicated region
    $region14: #{tpu_custom_call.1} parent=1 // pred_check
      _
    $region15: #{tpu_custom_call.1} parent=1 // pred_check_branch
      %85 = sbr.rel (0) target = $region17
    $region16: #{tpu_custom_call.1} parent=1 // pred_region
      %s87 = ssub.s32 256, 256
      %88 = vsyncadd [#allocation4], %s87
      %s89 = sshll.u32 [#allocation5], 4
      %s90 = int_to_ptr.vmem [resolvable:$true] %s89
      %95 = dma.vmem_to_hbm [thread:$0]  %s90, 256, %s2, [#allocation4], 128, 128, 8
    $region17: #{tpu_custom_call.1} parent=1 // pred_fallthru
      _
    // Predicated region
    $region18: #{tpu_custom_call.1} parent=1 // pred_check
      _
    $region19: #{tpu_custom_call.1} parent=1 // pred_check_branch
      %97 = sbr.rel (0) target = $region21
    $region20: #{tpu_custom_call.1} parent=1 // pred_region
      %98 = dma.done [#allocation4], 256
    $region21: #{tpu_custom_call.1} parent=1 // pred_fallthru
      _
    %99 = vsyncpa [#allocation3], 1
    %100 = vsyncpa [#allocation4], 1

</llo_original>
